<compile_context>
chip_gen: v7x
topology: tpu7x:2x2x1
jax: 0.10.0
libtpu: 0.0.40
codegen_flags: <defaults>
</compile_context>

<pallas_src>
import functools

import jax
import jax.numpy as jnp
from jax import lax
from jax.experimental import pallas as pl
from jax.experimental.pallas import tpu as pltpu


# --------------------------------------------------------------------------
# Tiling helpers (generation-aware VMEM budget)
# --------------------------------------------------------------------------
def _vmem_capacity_bytes():
    try:
        info = pltpu.get_tpu_info()
        for attr in ("vmem_capacity_bytes", "vmem_size_bytes", "vmem_bytes"):
            v = getattr(info, attr, None)
            if v:
                return int(v)
    except Exception:
        pass
    return 64 * 1024 * 1024  # conservative default (v7x per-core VMEM)


def _pass1_vmem_bytes(tco, k, thw):
    w = tco * k * 2 * 2          # resident weight tile (allow 2 buffers)
    p = k * thw * 2 * 2          # bf16 patch tile, double-buffered
    y = tco * thw * 2 * 2        # bf16 intermediate out, double-buffered
    stats = 4 * tco * 4          # psum/pssq output blocks
    scratch = 2 * tco * 4        # f32 accumulators
    return w + p + y + stats + scratch


def _pass2_vmem_bytes(tco, thw):
    y = tco * thw * 2 * 2        # bf16 intermediate in
    o = tco * thw * 4 * 2        # f32 output
    ss = 4 * tco * 4             # scale/shift
    return y + o + ss


def _tco_candidates(c_out):
    cands = [c_out]                              # prefer: weights fully resident
    for d in range(c_out - 8, 0, -8):            # 8-aligned divisors, descending
        if c_out % d == 0:
            cands.append(d)
    return cands


def _thw_candidates(ohw, cap):
    if ohw % 128 == 0:
        hi = min(cap, ohw)
        hi -= hi % 128
        cands = [d for d in range(hi, 127, -128) if ohw % d == 0]
        return cands or [128]
    return [ohw]  # full-extent lane block (legal: equals the full array dim)


def _choose_tiles(c_out, k, ohw, budget, thw_cap):
    thw_list = _thw_candidates(ohw, thw_cap)
    for tco in _tco_candidates(c_out):
        for thw in thw_list:
            need = max(_pass1_vmem_bytes(tco, k, thw), _pass2_vmem_bytes(tco, thw))
            if need <= budget:
                return tco, thw
    return _tco_candidates(c_out)[-1], thw_list[-1]


# --------------------------------------------------------------------------
# Pass 1: conv-as-GEMM (bf16 MXU, f32 acc) + per-image per-channel sum / sumsq
# --------------------------------------------------------------------------
def _conv_stats_kernel(w_ref, p_ref, y_ref, psum_ref, pssq_ref, acc_sum, acc_ssq):
    hw = pl.program_id(2)

    @pl.when(hw == 0)
    def _():
        acc_sum[...] = jnp.zeros_like(acc_sum)
        acc_ssq[...] = jnp.zeros_like(acc_ssq)

    # [tco, K](bf16) @ [K, t_hw](bf16) -> [tco, t_hw] with f32 accumulation (MXU).
    y = jnp.dot(w_ref[...], p_ref[0], preferred_element_type=jnp.float32)
    y_ref[0] = y.astype(y_ref.dtype)      # bf16 intermediate (halves HBM traffic)

    # Batch statistics from the f32 accumulator (before the bf16 cast).
    acc_sum[...] += jnp.sum(y, axis=1, keepdims=True)
    acc_ssq[...] += jnp.sum(y * y, axis=1, keepdims=True)

    @pl.when(hw == pl.num_programs(2) - 1)
    def _():
        psum_ref[0] = acc_sum[...]
        pssq_ref[0] = acc_ssq[...]


# --------------------------------------------------------------------------
# Pass 2: fused BN affine (single per-channel FMA) + activation
# --------------------------------------------------------------------------
def _norm_act_kernel(scale_ref, shift_ref, y_ref, o_ref, *,
                     use_leaky_relu, alpha, no_activation):
    out = y_ref[0].astype(jnp.float32) * scale_ref[...] + shift_ref[...]
    if not no_activation:
        if use_leaky_relu:
            out = jnp.where(out >= 0, out, alpha * out)
        else:
            out = jnp.maximum(out, 0.0)
    # TODO(synk): dropout with p > 0 would be applied here via pltpu.prng_* bits.
    o_ref[0] = out.astype(o_ref.dtype)


# --------------------------------------------------------------------------
# im2col in [N, K, OH*OW] layout (no big transpose relayout)
# --------------------------------------------------------------------------
def _im2col_nkm(x, kh, kw, stride, padding):
    """x: [N, C, H, W] -> patches [N, C*kh*kw, OH*OW].

    K index = c*(kh*kw) + i*kw + j, matching weight.reshape(C_out, C_in*KH*KW).
    """
    x = jnp.pad(x, ((0, 0), (0, 0), (padding, padding), (padding, padding)))
    n, c, h, w = x.shape
    oh = (h - kh) // stride + 1
    ow = (w - kw) // stride + 1
    cols = []
    for i in range(kh):
        for j in range(kw):
            cols.append(x[:, :, i:i + stride * oh:stride, j:j + stride * ow:stride])
    p = jnp.stack(cols, axis=2)                    # [N, C, kh*kw, OH, OW]
    p = p.reshape(n, c * kh * kw, oh * ow)         # adjacent-dim merge: free
    return p, oh, ow


# --------------------------------------------------------------------------
# Wrapper
# --------------------------------------------------------------------------
def batch_conv_layer_forward(x, weight, bias, gamma, beta, *,
                             stride=1, padding=0, eps=1e-5,
                             use_leaky_relu=False, alpha_leaky_relu=0.001,
                             no_activation=False, dropout_probability=0.0,
                             t_hw_cap=4096):
    """Forward pass of BatchConvLayer (training-mode BatchNorm batch stats).

    x:      [N, C_in, H, W]  (NCHW, float32)
    weight: [C_out, C_in, KH, KW]
    bias:   [C_out]  (ignored: cancels exactly under train-mode BN mean subtraction)
    gamma, beta: [C_out]
    returns [N, C_out, OH, OW] float32
    """
    del bias  # cancelled by BN batch-mean subtraction; would matter in eval mode.
    if dropout_probability != 0.0:
        # TODO(synk): fuse dropout masking (pltpu.prng_*) into pass 2.
        raise NotImplementedError("dropout_probability > 0 not implemented")

    N, C_in, H, W = x.shape
    C_out, _, kh, kw = weight.shape

    # bf16 patches halve the materialised-im2col HBM traffic; MXU runs bf16 too.
    patches, oh, ow = _im2col_nkm(x.astype(jnp.bfloat16), kh, kw, stride, padding)
    _, K, ohw = patches.shape
    w2 = weight.reshape(C_out, K).astype(jnp.bfloat16)

    # ---- generation-aware tiling -------------------------------------------
    vmem_cap = _vmem_capacity_bytes()
    vmem_limit = int(min(vmem_cap, 128 * 1024 * 1024) * 0.75)
    budget = int(vmem_limit * 0.7)
    tco, t_hw = _choose_tiles(C_out, K, ohw, budget, t_hw_cap)
    n_co = C_out // tco
    n_hw = ohw // t_hw

    m_total = N * ohw

    # ---- pass 1: conv GEMM + per-image batch statistics ---------------------
    flops1 = 2 * C_out * K * m_total
    bytes1 = int(w2.size) * 2 + int(patches.size) * 2 + C_out * m_total * 2 \
        + 4 * N * C_out * 4
    y_bf16, psum, pssq = pl.pallas_call(
        _conv_stats_kernel,
        out_shape=(jax.ShapeDtypeStruct((N, C_out, ohw), jnp.bfloat16),
                   jax.ShapeDtypeStruct((N, C_out, 1), jnp.float32),
                   jax.ShapeDtypeStruct((N, C_out, 1), jnp.float32)),
        grid=(n_co, N, n_hw),
        in_specs=[
            pl.BlockSpec((tco, K), lambda co, n, hw: (co, 0)),          # weights resident
            pl.BlockSpec((1, K, t_hw), lambda co, n, hw: (n, 0, hw)),   # stream patches
        ],
        out_specs=(
            pl.BlockSpec((1, tco, t_hw), lambda co, n, hw: (n, co, hw)),  # bf16 conv out
            pl.BlockSpec((1, tco, 1), lambda co, n, hw: (n, co, 0)),      # per-image sum
            pl.BlockSpec((1, tco, 1), lambda co, n, hw: (n, co, 0)),      # per-image sumsq
        ),
        scratch_shapes=[pltpu.VMEM((tco, 1), jnp.float32),
                        pltpu.VMEM((tco, 1), jnp.float32)],
        compiler_params=pltpu.CompilerParams(
            dimension_semantics=("parallel", "parallel", "arbitrary"),
            vmem_limit_bytes=vmem_limit),
        cost_estimate=pl.CostEstimate(flops=flops1, transcendentals=0,
                                      bytes_accessed=bytes1),
    )(w2, patches)

    # ---- fold train-mode BN into one per-channel scale/shift (tiny host-side JAX)
    m_true = jnp.float32(m_total)
    ch_sum = jnp.sum(psum, axis=0)        # (C_out, 1)
    ch_ssq = jnp.sum(pssq, axis=0)
    mean = ch_sum / m_true
    # TODO(synk): E[y^2]-E[y]^2 in f32 can cancel when |mean| >> std; use a
    #             shifted/compensated sum-of-squares for very large M.
    var = jnp.maximum(ch_ssq / m_true - mean * mean, 0.0)
    scale = gamma.reshape(C_out, 1).astype(jnp.float32) * lax.rsqrt(var + eps)
    shift = beta.reshape(C_out, 1).astype(jnp.float32) - mean * scale

    # ---- pass 2: normalize + activation, writes NCHW-layout output directly ---
    kernel2 = functools.partial(_norm_act_kernel,
                                use_leaky_relu=use_leaky_relu,
                                alpha=alpha_leaky_relu,
                                no_activation=no_activation)
    flops2 = 4 * C_out * m_total
    bytes2 = C_out * m_total * (2 + 4) + 2 * C_out * 4
    out3d = pl.pallas_call(
        kernel2,
        out_shape=jax.ShapeDtypeStruct((N, C_out, ohw), jnp.float32),
        grid=(n_co, N, n_hw),
        in_specs=[
            pl.BlockSpec((tco, 1), lambda co, n, hw: (co, 0)),
            pl.BlockSpec((tco, 1), lambda co, n, hw: (co, 0)),
            pl.BlockSpec((1, tco, t_hw), lambda co, n, hw: (n, co, hw)),
        ],
        out_specs=pl.BlockSpec((1, tco, t_hw), lambda co, n, hw: (n, co, hw)),
        compiler_params=pltpu.CompilerParams(
            dimension_semantics=("parallel", "parallel", "parallel"),
            vmem_limit_bytes=vmem_limit),
        cost_estimate=pl.CostEstimate(flops=flops2, transcendentals=0,
                                      bytes_accessed=bytes2),
    )(scale, shift, y_bf16)

    # [N, C_out, OH*OW] -> [N, C_out, OH, OW] is a free metadata reshape (NCHW).
    return out3d.reshape(N, C_out, oh, ow)


# --------------------------------------------------------------------------
# Pure-JAX reference (f32, HIGHEST precision) for a loose sanity check
# --------------------------------------------------------------------------
def _reference_forward(x, weight, bias, gamma, beta, *, stride, padding, eps,
                       use_leaky_relu, alpha_leaky_relu):
    y = lax.conv_general_dilated(
        x, weight, window_strides=(stride, stride),
        padding=[(padding, padding), (padding, padding)],
        dimension_numbers=('NCHW', 'OIHW', 'NCHW'),
        precision=lax.Precision.HIGHEST)
    y = y + bias[None, :, None, None]
    mean = jnp.mean(y, axis=(0, 2, 3), keepdims=True)
    var = jnp.mean((y - mean) ** 2, axis=(0, 2, 3), keepdims=True)
    y = (y - mean) * lax.rsqrt(var + eps)
    y = gamma[None, :, None, None] * y + beta[None, :, None, None]
    if use_leaky_relu:
        y = jnp.where(y >= 0, y, alpha_leaky_relu * y)
    else:
        y = jnp.maximum(y, 0.0)
    return y


if __name__ == "__main__":
    # Module config (small, deterministic)
    in_channels, out_channels = 4, 8
    kernel_size, stride, padding = 3, 1, 1
    batch_norm_epsilon = 1e-5
    use_leaky_relu = False
    alpha_leaky_relu = 0.001

    key = jax.random.PRNGKey(0)
    kx, kw, kb = jax.random.split(key, 3)

    # Input: NCHW
    x = jax.random.normal(kx, (2, in_channels, 16, 16), dtype=jnp.float32)

    # Deterministic parameter init (shapes match nn.Conv2d / nn.BatchNorm2d)
    fan_in = in_channels * kernel_size * kernel_size
    bound = 1.0 / (fan_in ** 0.5)
    weight = jax.random.uniform(kw, (out_channels, in_channels, kernel_size, kernel_size),
                                minval=-bound, maxval=bound, dtype=jnp.float32)
    bias = jax.random.uniform(kb, (out_channels,), minval=-bound, maxval=bound,
                              dtype=jnp.float32)
    gamma = jnp.ones((out_channels,), dtype=jnp.float32)   # BN weight init
    beta = jnp.zeros((out_channels,), dtype=jnp.float32)   # BN bias init

    out = batch_conv_layer_forward(
        x, weight, bias, gamma, beta,
        stride=stride, padding=padding, eps=batch_norm_epsilon,
        use_leaky_relu=use_leaky_relu, alpha_leaky_relu=alpha_leaky_relu,
        t_hw_cap=128)   # small lane tile so the demo exercises multi-step accumulation
    jax.block_until_ready(out)

    assert out.shape == (2, out_channels, 16, 16), out.shape

    ref = _reference_forward(x, weight, bias, gamma, beta,
                             stride=stride, padding=padding, eps=batch_norm_epsilon,
                             use_leaky_relu=use_leaky_relu,
                             alpha_leaky_relu=alpha_leaky_relu)
    assert jnp.allclose(out, ref, atol=0.1, rtol=0.1), \
        float(jnp.max(jnp.abs(out - ref)))

    print("KERNEL_OK")
</pallas_src>

<mosaic_0001>
module attributes {stable_mosaic.version = 11 : i64} {
  func.func @_conv_stats_kernel(%arg0: i32, %arg1: i32, %arg2: i32, %arg3: memref<8x36xbf16, #tpu.memory_space<vmem>>, %arg4: memref<1x36x128xbf16, #tpu.memory_space<vmem>>, %arg5: memref<1x8x128xbf16, #tpu.memory_space<vmem>>, %arg6: memref<1x8x1xf32, #tpu.memory_space<vmem>>, %arg7: memref<1x8x1xf32, #tpu.memory_space<vmem>>, %arg8: memref<8x1xf32, #tpu.memory_space<vmem>>, %arg9: memref<8x1xf32, #tpu.memory_space<vmem>>) attributes {dimension_semantics = [#tpu.dimension_semantics<parallel>, #tpu.dimension_semantics<parallel>, #tpu.dimension_semantics<arbitrary>], iteration_bounds = array<i64: 1, 2, 2>, scalar_prefetch = 0 : i64, scratch_operands = 2 : i64, tpu.core_type = #tpu.core_type<tc>, window_params = [{transform_indices = @transform_0, window_bounds = array<i64: 8, 36>}, {transform_indices = @transform_1, window_bounds = array<i64: 1, 36, 128>}, {transform_indices = @transform_2, window_bounds = array<i64: 1, 8, 128>}, {transform_indices = @transform_3, window_bounds = array<i64: 1, 8, 1>}, {transform_indices = @transform_4, window_bounds = array<i64: 1, 8, 1>}]} {
    %c0_i32 = arith.constant 0 : i32
    %0 = arith.cmpi eq, %arg2, %c0_i32 : i32
    %1 = arith.extui %0 : i1 to i32
    %c0_i32_0 = arith.constant 0 : i32
    %2 = arith.cmpi ne, %1, %c0_i32_0 : i32
    scf.if %2 {
      %cst_19 = arith.constant 0.000000e+00 : f32
      %25 = vector.broadcast %cst_19 : f32 to vector<8x1xf32>
      %c0_20 = arith.constant 0 : index
      %c0_21 = arith.constant 0 : index
      %26 = vector.load %arg8[%c0_20, %c0_21] : memref<8x1xf32, #tpu.memory_space<vmem>>, vector<8x1xf32>
      tpu.vector_store %arg8[%c0_20, %c0_21], %25 {strides = array<i32>} : memref<8x1xf32, #tpu.memory_space<vmem>>, vector<8x1xf32>,
      %cst_22 = arith.constant 0.000000e+00 : f32
      %27 = vector.broadcast %cst_22 : f32 to vector<8x1xf32>
      %c0_23 = arith.constant 0 : index
      %c0_24 = arith.constant 0 : index
      %28 = vector.load %arg9[%c0_23, %c0_24] : memref<8x1xf32, #tpu.memory_space<vmem>>, vector<8x1xf32>
      tpu.vector_store %arg9[%c0_23, %c0_24], %27 {strides = array<i32>} : memref<8x1xf32, #tpu.memory_space<vmem>>, vector<8x1xf32>,
    } else {
    }
    %c0 = arith.constant 0 : index
    %c0_1 = arith.constant 0 : index
    %3 = vector.load %arg3[%c0, %c0_1] : memref<8x36xbf16, #tpu.memory_space<vmem>>, vector<8x36xbf16>
    %c0_2 = arith.constant 0 : index
    %c0_3 = arith.constant 0 : index
    %c0_4 = arith.constant 0 : index
    %4 = vector.load %arg4[%c0_2, %c0_3, %c0_4] : memref<1x36x128xbf16, #tpu.memory_space<vmem>>, vector<1x36x128xbf16>
    %5 = vector.shape_cast %4 : vector<1x36x128xbf16> to vector<36x128xbf16>
    %cst = arith.constant dense<0.000000e+00> : vector<8x128xf32>
    %6 = tpu.matmul %3, %5, %cst {dimension_numbers = #tpu.dot_dimension_numbers<[1], [0], [0], [1], [0, 0, 1, 1], [], []>} : vector<8x36xbf16>, vector<36x128xbf16>, vector<8x128xf32> -> vector<8x128xf32>
    %7 = arith.truncf %6 : vector<8x128xf32> to vector<8x128xbf16>
    %c0_5 = arith.constant 0 : index
    %c0_6 = arith.constant 0 : index
    %c0_7 = arith.constant 0 : index
    %8 = vector.load %arg5[%c0_5, %c0_6, %c0_7] : memref<1x8x128xbf16, #tpu.memory_space<vmem>>, vector<1x8x128xbf16>
    %9 = vector.shape_cast %8 : vector<1x8x128xbf16> to vector<8x128xbf16>
    %10 = vector.shape_cast %7 : vector<8x128xbf16> to vector<1x8x128xbf16>
    tpu.vector_store %arg5[%c0_5, %c0_6, %c0_7], %10 {strides = array<i32>} : memref<1x8x128xbf16, #tpu.memory_space<vmem>>, vector<1x8x128xbf16>,
    %c0_8 = arith.constant 0 : index
    %c0_9 = arith.constant 0 : index
    %11 = vector.load %arg8[%c0_8, %c0_9] : memref<8x1xf32, #tpu.memory_space<vmem>>, vector<8x1xf32>
    %cst_10 = arith.constant dense<0.000000e+00> : vector<8xf32>
    %12 = vector.multi_reduction <add>, %6, %cst_10 [1] : vector<8x128xf32> to vector<8xf32>
    %13 = vector.shape_cast %12 : vector<8xf32> to vector<8x1xf32>
    %14 = arith.addf %11, %13 : vector<8x1xf32>
    %c0_11 = arith.constant 0 : index
    %c0_12 = arith.constant 0 : index
    %15 = vector.load %arg8[%c0_11, %c0_12] : memref<8x1xf32, #tpu.memory_space<vmem>>, vector<8x1xf32>
    tpu.vector_store %arg8[%c0_11, %c0_12], %14 {strides = array<i32>} : memref<8x1xf32, #tpu.memory_space<vmem>>, vector<8x1xf32>,
    %c0_13 = arith.constant 0 : index
    %c0_14 = arith.constant 0 : index
    %16 = vector.load %arg9[%c0_13, %c0_14] : memref<8x1xf32, #tpu.memory_space<vmem>>, vector<8x1xf32>
    %17 = arith.mulf %6, %6 : vector<8x128xf32>
    %cst_15 = arith.constant dense<0.000000e+00> : vector<8xf32>
    %18 = vector.multi_reduction <add>, %17, %cst_15 [1] : vector<8x128xf32> to vector<8xf32>
    %19 = vector.shape_cast %18 : vector<8xf32> to vector<8x1xf32>
    %20 = arith.addf %16, %19 : vector<8x1xf32>
    %c0_16 = arith.constant 0 : index
    %c0_17 = arith.constant 0 : index
    %21 = vector.load %arg9[%c0_16, %c0_17] : memref<8x1xf32, #tpu.memory_space<vmem>>, vector<8x1xf32>
    tpu.vector_store %arg9[%c0_16, %c0_17], %20 {strides = array<i32>} : memref<8x1xf32, #tpu.memory_space<vmem>>, vector<8x1xf32>,
    %c1_i32 = arith.constant 1 : i32
    %22 = arith.cmpi eq, %arg2, %c1_i32 : i32
    %23 = arith.extui %22 : i1 to i32
    %c0_i32_18 = arith.constant 0 : i32
    %24 = arith.cmpi ne, %23, %c0_i32_18 : i32
    scf.if %24 {
      %c0_19 = arith.constant 0 : index
      %c0_20 = arith.constant 0 : index
      %25 = vector.load %arg8[%c0_19, %c0_20] : memref<8x1xf32, #tpu.memory_space<vmem>>, vector<8x1xf32>
      %c0_21 = arith.constant 0 : index
      %c0_22 = arith.constant 0 : index
      %c0_23 = arith.constant 0 : index
      %26 = vector.load %arg6[%c0_21, %c0_22, %c0_23] : memref<1x8x1xf32, #tpu.memory_space<vmem>>, vector<1x8x1xf32>
      %27 = vector.shape_cast %26 : vector<1x8x1xf32> to vector<8x1xf32>
      %28 = vector.shape_cast %25 : vector<8x1xf32> to vector<1x8x1xf32>
      tpu.vector_store %arg6[%c0_21, %c0_22, %c0_23], %28 {strides = array<i32>} : memref<1x8x1xf32, #tpu.memory_space<vmem>>, vector<1x8x1xf32>,
      %c0_24 = arith.constant 0 : index
      %c0_25 = arith.constant 0 : index
      %29 = vector.load %arg9[%c0_24, %c0_25] : memref<8x1xf32, #tpu.memory_space<vmem>>, vector<8x1xf32>
      %c0_26 = arith.constant 0 : index
      %c0_27 = arith.constant 0 : index
      %c0_28 = arith.constant 0 : index
      %30 = vector.load %arg7[%c0_26, %c0_27, %c0_28] : memref<1x8x1xf32, #tpu.memory_space<vmem>>, vector<1x8x1xf32>
      %31 = vector.shape_cast %30 : vector<1x8x1xf32> to vector<8x1xf32>
      %32 = vector.shape_cast %29 : vector<8x1xf32> to vector<1x8x1xf32>
      tpu.vector_store %arg7[%c0_26, %c0_27, %c0_28], %32 {strides = array<i32>} : memref<1x8x1xf32, #tpu.memory_space<vmem>>, vector<1x8x1xf32>,
    } else {
    }
    return
  }
  func.func @transform_0(%arg0: i32, %arg1: i32, %arg2: i32) -> (i32, i32) {
    %c0_i32 = arith.constant 0 : i32
    %c0_i32_0 = arith.constant 0 : i32
    return %arg0, %c0_i32 : i32, i32
  }
  func.func @transform_1(%arg0: i32, %arg1: i32, %arg2: i32) -> (i32, i32, i32) {
    %c0_i32 = arith.constant 0 : i32
    %c0_i32_0 = arith.constant 0 : i32
    return %arg1, %c0_i32, %arg2 : i32, i32, i32
  }
  func.func @transform_2(%arg0: i32, %arg1: i32, %arg2: i32) -> (i32, i32, i32) {
    %c0_i32 = arith.constant 0 : i32
    return %arg1, %arg0, %arg2 : i32, i32, i32
  }
  func.func @transform_3(%arg0: i32, %arg1: i32, %arg2: i32) -> (i32, i32, i32) {
    %c0_i32 = arith.constant 0 : i32
    %c0_i32_0 = arith.constant 0 : i32
    return %arg1, %arg0, %c0_i32 : i32, i32, i32
  }
  func.func @transform_4(%arg0: i32, %arg1: i32, %arg2: i32) -> (i32, i32, i32) {
    %c0_i32 = arith.constant 0 : i32
    %c0_i32_0 = arith.constant 0 : i32
    return %arg1, %arg0, %c0_i32 : i32, i32, i32
  }
}

</mosaic_0001>

<llo_original>
// kernel: tpu_custom_call.1
$region0: #{tpu_custom_call.1}
  #allocation0 [shape = 'u32[]', space=smem, size = 0x4, offset = 0x4, fixed_abs, tag = 'smem constant byte address 0x4 - core index']
  #allocation1 [shape = 'u32[144,128]{1,0:T(1,128)}', space=vmem, size = 0x12000, scoped, tag = 'internal scratch']
  #allocation2 [shape = 'f32[8,1]{1,0:T(8,128)}', space=vmem, size = 0x1000, scoped, tag = 'scratch operand']
  #allocation3 [shape = 'f32[8,1]{1,0:T(8,128)}', space=vmem, size = 0x1000, scoped, tag = 'scratch operand']
  %s0 = inlined_call_operand.vmem [shape: bf16[8,36], index: 0, kind: input, shape index: {}]
  %s1 = inlined_call_operand.vmem [shape: bf16[2,36,256], index: 1, kind: input, shape index: {}]
  %s2 = inlined_call_operand.hbm [shape: bf16[2,8,256], index: 2, kind: output, shape index: {0}]
  %s3 = inlined_call_operand.vmem [shape: f32[2,8,1], index: 3, kind: output, shape index: {1}]
  %s4 = inlined_call_operand.vmem [shape: f32[2,8,1], index: 4, kind: output, shape index: {2}]
  %5 = xla_tuple %s2, %s3, %s4
  %s6 = sld [smem:[#allocation0]]
  $region106: #{tpu_custom_call.1} parent=0
    _
  %s8 = ssub.s32 1, %s6
  %s9 = scalar_select 0, %s8, %s6
  $region1: #{tpu_custom_call.1} parent=0
    #allocation4 [shape = 'u8[20480]{0}', space=vmem, size = 0x5000, scoped, tag = 'input window, operand 1']
    #allocation5 [shape = 'u8[4096]{0}', space=vmem, size = 0x1000, scoped, tag = 'output window, operand 0']
    #allocation6 [shape = 's32[2]{0}', space=sflag, size = 0x8, scoped, tag = 'scoped memory for tpu_custom_call.1']
    %10 = vsyncpa [#allocation6], 0
    %s11 = scalar_lea.sflag [#allocation6], 1
    %12 = vsyncpa %s11, 0
    loop: start=0, step=1, limit=6
    $region2: #{tpu_custom_call.1} parent=1 // loop_pre_header
      _
    $region3: #{tpu_custom_call.1} parent=1 // loop_header
      %s14 = sphi 0, %s18
      %p15 = scmp.ge.s32.totalorder %s14, 6
      %s21 = sphi 0, %s40
      %s22 = sphi 0, %s36
      %s23 = sphi 0, %s32
      %s24 = sphi 0, %s21
      %s25 = sphi 0, %s22
      %s26 = sphi 0, %s23
      %s27 = sphi 0, %s24
      %s28 = sphi 0, %s25
      %s29 = sphi 0, %s26
      %s43 = sphi 0, %s45
      %s46 = sphi 0, %s43
      %s47 = sphi 0, %s46
      %s63 = sphi 0, %s47
      %s71 = sphi 0, %s73
      %s74 = sphi 0, %s71
      %s75 = sphi 0, %s74
      %s91 = sphi 0, %s75
      %s101 = sphi 0, %s103
      %s104 = sphi 0, %s101
      %s105 = sphi 0, %s104
      %s121 = sphi 0, %s105
      %s129 = sphi 0, %s131
      %s132 = sphi 0, %s129
      %s133 = sphi 0, %s132
      %s149 = sphi 0, %s133
      %s157 = sphi 0, %s159
      %s160 = sphi 0, %s157
      %s161 = sphi 0, %s160
      %s177 = sphi 0, %s161
    $region4: #{tpu_custom_call.1} parent=1 // loop_header_branch
      %17 = sbr.rel (%p15) target = $region8
    $region5: #{tpu_custom_call.1} parent=1 // loop_body
      %s19 = ssub.s32 %s14, 1
      %s20 = ssub.s32 %s14, 2
      %s30 = sadd.s32 1, %s23
      %p31 = scmp.ge.s32.totalorder %s30, 2
      %s32 = scalar_select %p31, 0, %s30
      %s33 = sadd.s32 1, %s22
      %s34 = scalar_select %p31, %s33, %s22
      %p35 = scmp.ge.s32.totalorder %s34, 2
      %s36 = scalar_select %p35, 0, %s34
      %s37 = sadd.s32 1, %s21
      %s38 = scalar_select %p35, %s37, %s21
      %p39 = scmp.ge.s32.totalorder %s38, 1
      %s40 = scalar_select %p39, 0, %s38
      %s41 = ssub.s32 %s21, %s40
      %p42 = scmp.eq.s32.totalorder %s41, 0
      %s44 = sadd.s32 %s43, 1
      %s45 = scalar_select %p42, %s43, %s44
      %p48 = pneg %p42
      %p49 = scmp.eq.s32.totalorder %s14, 3
      %p50 = por %p48, %p49
      %p51 = scmp.ne.s32.totalorder %s43, %s46
      %p52 = scmp.eq.s32.totalorder %s14, 0
      %p53 = por %p51, %p52
      %p54 = scmp.ne.s32.totalorder %s43, %s46
      %p55 = scmp.eq.s32.totalorder %s19, 3
      %p56 = por %p54, %p55
      %p57 = scmp.ne.s32.totalorder %s46, %s47
      %p58 = scmp.eq.s32.totalorder %s19, 0
      %p59 = por %p57, %p58
      %p60 = scmp.ne.s32.totalorder %s46, %s47
      %p61 = scmp.eq.s32.totalorder %s20, 3
      %p62 = por %p60, %p61
      %p64 = scmp.ne.s32.totalorder %s47, %s63
      %p65 = scmp.eq.s32.totalorder %s20, 0
      %p66 = por %p64, %p65
      %s67 = ssub.s32 %s22, %s36
      %s68 = ssub.s32 %s23, %s32
      %s69 = sor.u32 %s67, %s68
      %p70 = scmp.eq.s32.totalorder %s69, 0
      %s72 = sadd.s32 %s71, 1
      %s73 = scalar_select %p70, %s71, %s72
      %p76 = pneg %p70
      %p77 = scmp.eq.s32.totalorder %s14, 3
      %p78 = por %p76, %p77
      %p79 = scmp.ne.s32.totalorder %s71, %s74
      %p80 = scmp.eq.s32.totalorder %s14, 0
      %p81 = por %p79, %p80
      %p82 = scmp.ne.s32.totalorder %s71, %s74
      %p83 = scmp.eq.s32.totalorder %s19, 3
      %p84 = por %p82, %p83
      %p85 = scmp.ne.s32.totalorder %s74, %s75
      %p86 = scmp.eq.s32.totalorder %s19, 0
      %p87 = por %p85, %p86
      %p88 = scmp.ne.s32.totalorder %s74, %s75
      %p89 = scmp.eq.s32.totalorder %s20, 3
      %p90 = por %p88, %p89
      %p92 = scmp.ne.s32.totalorder %s75, %s91
      %p93 = scmp.eq.s32.totalorder %s20, 0
      %p94 = por %p92, %p93
      %s95 = ssub.s32 %s22, %s36
      %s96 = ssub.s32 %s21, %s40
      %s97 = sor.u32 %s95, %s96
      %s98 = ssub.s32 %s23, %s32
      %s99 = sor.u32 %s97, %s98
      %p100 = scmp.eq.s32.totalorder %s99, 0
      %s102 = sadd.s32 %s101, 1
      %s103 = scalar_select %p100, %s101, %s102
      %p106 = pneg %p100
      %p107 = scmp.eq.s32.totalorder %s14, 3
      %p108 = por %p106, %p107
      %p109 = scmp.ne.s32.totalorder %s101, %s104
      %p110 = scmp.eq.s32.totalorder %s14, 0
      %p111 = por %p109, %p110
      %p112 = scmp.ne.s32.totalorder %s101, %s104
      %p113 = scmp.eq.s32.totalorder %s19, 3
      %p114 = por %p112, %p113
      %p115 = scmp.ne.s32.totalorder %s104, %s105
      %p116 = scmp.eq.s32.totalorder %s19, 0
      %p117 = por %p115, %p116
      %p118 = scmp.ne.s32.totalorder %s104, %s105
      %p119 = scmp.eq.s32.totalorder %s20, 3
      %p120 = por %p118, %p119
      %p122 = scmp.ne.s32.totalorder %s105, %s121
      %p123 = scmp.eq.s32.totalorder %s20, 0
      %p124 = por %p122, %p123
      %s125 = ssub.s32 %s22, %s36
      %s126 = ssub.s32 %s21, %s40
      %s127 = sor.u32 %s125, %s126
      %p128 = scmp.eq.s32.totalorder %s127, 0
      %s130 = sadd.s32 %s129, 1
      %s131 = scalar_select %p128, %s129, %s130
      %p134 = pneg %p128
      %p135 = scmp.eq.s32.totalorder %s14, 3
      %p136 = por %p134, %p135
      %p137 = scmp.ne.s32.totalorder %s129, %s132
      %p138 = scmp.eq.s32.totalorder %s14, 0
      %p139 = por %p137, %p138
      %p140 = scmp.ne.s32.totalorder %s129, %s132
      %p141 = scmp.eq.s32.totalorder %s19, 3
      %p142 = por %p140, %p141
      %p143 = scmp.ne.s32.totalorder %s132, %s133
      %p144 = scmp.eq.s32.totalorder %s19, 0
      %p145 = por %p143, %p144
      %p146 = scmp.ne.s32.totalorder %s132, %s133
      %p147 = scmp.eq.s32.totalorder %s20, 3
      %p148 = por %p146, %p147
      %p150 = scmp.ne.s32.totalorder %s133, %s149
      %p151 = scmp.eq.s32.totalorder %s20, 0
      %p152 = por %p150, %p151
      %s153 = ssub.s32 %s22, %s36
      %s154 = ssub.s32 %s21, %s40
      %s155 = sor.u32 %s153, %s154
      %p156 = scmp.eq.s32.totalorder %s155, 0
      %s158 = sadd.s32 %s157, 1
      %s159 = scalar_select %p156, %s157, %s158
      %p162 = pneg %p156
      %p163 = scmp.eq.s32.totalorder %s14, 3
      %p164 = por %p162, %p163
      %p165 = scmp.ne.s32.totalorder %s157, %s160
      %p166 = scmp.eq.s32.totalorder %s14, 0
      %p167 = por %p165, %p166
      %p168 = scmp.ne.s32.totalorder %s157, %s160
      %p169 = scmp.eq.s32.totalorder %s19, 3
      %p170 = por %p168, %p169
      %p171 = scmp.ne.s32.totalorder %s160, %s161
      %p172 = scmp.eq.s32.totalorder %s19, 0
      %p173 = por %p171, %p172
      %p174 = scmp.ne.s32.totalorder %s160, %s161
      %p175 = scmp.eq.s32.totalorder %s20, 3
      %p176 = por %p174, %p175
      %p178 = scmp.ne.s32.totalorder %s161, %s177
      %p179 = scmp.eq.s32.totalorder %s20, 0
      %p180 = por %p178, %p179
      %p181 = scmp.le.s32.totalorder 1, %s14
      %p182 = scmp.lt.s32.totalorder %s14, 5
      %p183 = pnand %p181, %p182
      %p184 = pneg %p183
      // Predicated region
      $region9: #{tpu_custom_call.1} parent=5 // pred_check
        _
      $region10: #{tpu_custom_call.1} parent=5 // pred_check_branch
        %186 = sbr.rel (%p183) target = $region12
      $region11: #{tpu_custom_call.1} parent=5 // pred_region
        %s187 = ssub.s32 %s14, 1
        // Predicated region
        $region13: #{tpu_custom_call.1} parent=11 // pred_check
          %p188 = pneg %p59
        $region14: #{tpu_custom_call.1} parent=11 // pred_check_branch
          %190 = sbr.rel (%p188) target = $region16
        $region15: #{tpu_custom_call.1} parent=11 // pred_region
          %p191 = scmp.lt.s32.totalorder %s24, 0
          %s192 = scalar_select %p191, %s24, 0
          %s193 = smul.addr %s192, 4
          %s194 = scalar_lea.vmem %s0, %s193
        $region16: #{tpu_custom_call.1} parent=11 // pred_fallthru
          _
      $region12: #{tpu_custom_call.1} parent=5 // pred_fallthru
        _
      %p195 = scmp.lt.s32.totalorder %s14, 4
      // Predicated region
      $region17: #{tpu_custom_call.1} parent=5 // pred_check
        %p196 = pneg %p195
      $region18: #{tpu_custom_call.1} parent=5 // pred_check_branch
        %198 = sbr.rel (%p196) target = $region20
      $region19: #{tpu_custom_call.1} parent=5 // pred_region
        // Predicated region
        $region21: #{tpu_custom_call.1} parent=19 // pred_check
          %p199 = pneg %p81
        $region22: #{tpu_custom_call.1} parent=19 // pred_check_branch
          %201 = sbr.rel (%p199) target = $region24
        $region23: #{tpu_custom_call.1} parent=19 // pred_region
          %s202 = sand.u32 %s71, 1
          %s203 = sand.u32 %s71, 1
          %s204 = smul.addr %s203, 20
          %s205 = scalar_lea.vmem [#allocation4], %s204
          %s206 = smul.addr %s22, 10
          %s207 = sadd.s32 %s23, %s206
          %s208 = smul.addr %s207, 4
          %s209 = scalar_lea.vmem %s1, %s208
          // Predicated region
          $region25: #{tpu_custom_call.1} parent=23 // pred_check
            _
          $region26: #{tpu_custom_call.1} parent=23 // pred_check_branch
            %211 = sbr.rel (0) target = $region28
          $region27: #{tpu_custom_call.1} parent=23 // pred_region
            // Predicated region
            $region29: #{tpu_custom_call.1} parent=27 // pred_check
              _
            $region30: #{tpu_custom_call.1} parent=27 // pred_check_branch
              %213 = sbr.rel target = $region32
            $region31: #{tpu_custom_call.1} parent=27 // pred_region
              // Predicated region
              $region44: #{tpu_custom_call.1} parent=31 // pred_check
                _
              $region45: #{tpu_custom_call.1} parent=31 // pred_check_branch
                %236 = sbr.rel (0) target = $region47
              $region46: #{tpu_custom_call.1} parent=31 // pred_region
                loop: start=0, step=1, limit=1
                $region48: #{tpu_custom_call.1} parent=46 // loop_pre_header
                  _
                $region49: #{tpu_custom_call.1} parent=46 // loop_header
                  %s238 = sphi 0, %s242
                  %p239 = scmp.ge.s32.totalorder %s238, 1
                  %s243 = sphi %s209, %s209
                  %s244 = sphi %s205, %s205
                $region50: #{tpu_custom_call.1} parent=46 // loop_header_branch
                  %241 = sbr.rel (%p239) target = $region54
                $region51: #{tpu_custom_call.1} parent=46 // loop_body
                  _
                $region52: #{tpu_custom_call.1} parent=46 // loop_footer
                  %s242 = sadd.s32 1, %s238
                $region53: #{tpu_custom_call.1} parent=46 // loop_footer_branch
                  %237 = sbr.rel target = $region49
                $region54: #{tpu_custom_call.1} parent=46 // loop_exit
                  _
                loop: start=0, step=1, limit=1
                $region55: #{tpu_custom_call.1} parent=46 // loop_pre_header
                  _
                $region56: #{tpu_custom_call.1} parent=46 // loop_header
                  %s247 = sphi 0, %s251
                  %p248 = scmp.ge.s32.totalorder %s247, 1
                  %s252 = sphi %s209, %s209
                  %s253 = sphi %s205, %s205
                $region57: #{tpu_custom_call.1} parent=46 // loop_header_branch
                  %250 = sbr.rel (%p248) target = $region61
                $region58: #{tpu_custom_call.1} parent=46 // loop_body
                  %v254 = vld [vmem:[%s252] sm:$0xf]
                  %255 = vst [vmem:[%s253] sm:$0xf] %v254
                  %v256 = vld [vmem:[%s252 + $0x8] sm:$0xf]
                  %257 = vst [vmem:[%s253 + $0x4] sm:$0xf] %v256
                  %v258 = vld [vmem:[%s252 + $0x10] sm:$0xf]
                  %259 = vst [vmem:[%s253 + $0x8] sm:$0xf] %v258
                  %v260 = vld [vmem:[%s252 + $0x18] sm:$0xf]
                  %261 = vst [vmem:[%s253 + $0xc] sm:$0xf] %v260
                  %v262 = vld [vmem:[%s252 + $0x20] sm:$0xf]
                  %263 = vst [vmem:[%s253 + $0x10] sm:$0xf] %v262
                $region59: #{tpu_custom_call.1} parent=46 // loop_footer
                  %s251 = sadd.s32 1, %s247
                $region60: #{tpu_custom_call.1} parent=46 // loop_footer_branch
                  %246 = sbr.rel target = $region56
                $region61: #{tpu_custom_call.1} parent=46 // loop_exit
                  _
              $region47: #{tpu_custom_call.1} parent=31 // pred_fallthru
                _
            $region32: #{tpu_custom_call.1} parent=27 // pred_fallthru
              _
            // Predicated region
            $region33: #{tpu_custom_call.1} parent=27 // pred_check
              _
            $region34: #{tpu_custom_call.1} parent=27 // pred_check_branch
              %215 = sbr.rel (0) target = $region36
            $region35: #{tpu_custom_call.1} parent=27 // pred_region
              loop: start=0, step=1, limit=1
              $region37: #{tpu_custom_call.1} parent=35 // loop_pre_header
                _
              $region38: #{tpu_custom_call.1} parent=35 // loop_header
                %s218 = sphi 0, %s222
                %p219 = scmp.ge.s32.totalorder %s218, 1
                %s223 = sphi %s209, %s209
                %s224 = sphi %s205, %s205
              $region39: #{tpu_custom_call.1} parent=35 // loop_header_branch
                %221 = sbr.rel (%p219) target = $region43
              $region40: #{tpu_custom_call.1} parent=35 // loop_body
                %v225 = vld [vmem:[%s223] sm:$0xf]
                %226 = vst [vmem:[%s224] sm:$0xf] %v225
                %v227 = vld [vmem:[%s223 + $0x8] sm:$0xf]
                %228 = vst [vmem:[%s224 + $0x4] sm:$0xf] %v227
                %v229 = vld [vmem:[%s223 + $0x10] sm:$0xf]
                %230 = vst [vmem:[%s224 + $0x8] sm:$0xf] %v229
                %v231 = vld [vmem:[%s223 + $0x18] sm:$0xf]
                %232 = vst [vmem:[%s224 + $0xc] sm:$0xf] %v231
                %v233 = vld [vmem:[%s223 + $0x20] sm:$0xf]
                %234 = vst [vmem:[%s224 + $0x10] sm:$0xf] %v233
              $region41: #{tpu_custom_call.1} parent=35 // loop_footer
                %s222 = sadd.s32 1, %s218
              $region42: #{tpu_custom_call.1} parent=35 // loop_footer_branch
                %217 = sbr.rel target = $region38
              $region43: #{tpu_custom_call.1} parent=35 // loop_exit
                _
            $region36: #{tpu_custom_call.1} parent=27 // pred_fallthru
              _
          $region28: #{tpu_custom_call.1} parent=23 // pred_fallthru
            _
          %264 = vnop
        $region24: #{tpu_custom_call.1} parent=19 // pred_fallthru
          _
      $region20: #{tpu_custom_call.1} parent=5 // pred_fallthru
        _
      %p265 = scmp.le.s32.totalorder 1, %s14
      %p266 = scmp.lt.s32.totalorder %s14, 5
      %p267 = pnand %p265, %p266
      %p268 = pneg %p267
      // Predicated region
      $region62: #{tpu_custom_call.1} parent=5 // pred_check
        _
      $region63: #{tpu_custom_call.1} parent=5 // pred_check_branch
        %270 = sbr.rel (%p267) target = $region65
      $region64: #{tpu_custom_call.1} parent=5 // pred_region
        %s271 = ssub.s32 %s14, 1
        %s272 = sand.u32 %s74, 1
        %s273 = sand.u32 %s74, 1
        %s274 = smul.addr %s273, 20
        %s275 = scalar_lea.vmem [#allocation4], %s274
        // Predicated region
        $region66: #{tpu_custom_call.1} parent=64 // pred_check
          %p276 = pneg %p87
        $region67: #{tpu_custom_call.1} parent=64 // pred_check_branch
          %278 = sbr.rel (%p276) target = $region69
        $region68: #{tpu_custom_call.1} parent=64 // pred_region
          _
        $region69: #{tpu_custom_call.1} parent=64 // pred_fallthru
          _
        %p279 = scmp.lt.s32.totalorder %s24, 0
        %s280 = scalar_select %p279, %s24, 0
        %s281 = smul.addr %s280, 4
        %s282 = scalar_lea.vmem %s0, %s281
        %p283 = pneg %p59
        %p284 = pneg %p56
        %s285 = sand.u32 %s74, 1
        %s286 = sand.u32 %s74, 1
        %s287 = smul.addr %s286, 20
        %s288 = scalar_lea.vmem [#allocation4], %s287
        %p289 = pneg %p87
        %p290 = pneg %p84
        %p291 = pneg %p117
        %p292 = pneg %p114
        %s293 = sand.u32 %s104, 1
        %s294 = scalar_lea.sflag [#allocation6], %s293
        %s295 = sand.u32 %s104, 1
        %s296 = smul.addr %s295, 4
        %s297 = scalar_lea.vmem [#allocation5], %s296
        %p298 = pneg %p145
        %p299 = pneg %p142
        %p300 = scmp.lt.s32.totalorder %s25, 1
        %s301 = scalar_select %p300, %s25, 1
        %p302 = scmp.lt.s32.totalorder %s24, 0
        %s303 = scalar_select %p302, %s24, 0
        %s304 = sadd.s32 %s303, %s301
        %s305 = smul.addr %s304, 8
        %s306 = scalar_lea.vmem %s3, %s305
        %p307 = pneg %p173
        %p308 = pneg %p170
        %p309 = scmp.lt.s32.totalorder %s25, 1
        %s310 = scalar_select %p309, %s25, 1
        %p311 = scmp.lt.s32.totalorder %s24, 0
        %s312 = scalar_select %p311, %s24, 0
        %s313 = sadd.s32 %s312, %s310
        %s314 = smul.addr %s313, 8
        %s315 = scalar_lea.vmem %s4, %s314
        %p316 = scmp.lt.s32.totalorder %s24, 0
        %s317 = scalar_select %p316, %s24, 0
        %s318 = smul.addr %s317, 4
        %s319 = scalar_lea.vmem %s0, %s318
        %p320 = scmp.lt.s32.totalorder %s25, 1
        %s321 = scalar_select %p320, %s25, 1
        %p322 = scmp.lt.s32.totalorder %s24, 0
        %s323 = scalar_select %p322, %s24, 0
        %s324 = sadd.s32 %s323, %s321
        %s325 = smul.addr %s324, 8
        %s326 = scalar_lea.vmem %s3, %s325
        %p327 = scmp.lt.s32.totalorder %s25, 1
        %s328 = scalar_select %p327, %s25, 1
        %p329 = scmp.lt.s32.totalorder %s24, 0
        %s330 = scalar_select %p329, %s24, 0
        %s331 = sadd.s32 %s330, %s328
        %s332 = smul.addr %s331, 8
        %s333 = scalar_lea.vmem %s4, %s332
        %p335 = scmp.eq.s32.totalorder %s26, 0
        // Predicated region
        $region70: #{tpu_custom_call.1} parent=64 // pred_check
          %p336 = pneg %p335
        $region71: #{tpu_custom_call.1} parent=64 // pred_check_branch
          %338 = sbr.rel (%p336) target = $region73
        $region72: #{tpu_custom_call.1} parent=64 // pred_region
          %vm339 = vcmask 7168
          %340 = vst.msk [vmem:[#allocation2] sm:$0xff] %vm339, 0.0
          %341 = vst.msk [vmem:[#allocation3] sm:$0xff] %vm339, 0.0
        $region73: #{tpu_custom_call.1} parent=64 // pred_fallthru
          _
        %v342 = vld [vmem:[%s319] sm:$0xf]
        %v343 = vld [vmem:[%s275] sm:$0xf]
        %v344 = vld [vmem:[%s275 + $0x4] sm:$0xf]
        %v345 = vld [vmem:[%s275 + $0x8] sm:$0xf]
        %v346 = vld [vmem:[%s275 + $0xc] sm:$0xf]
        %v347 = vld [vmem:[%s275 + $0x10] sm:$0x3]
        %v353 = vunpack.c.l.b16 %v343
        %v354 = vunpack.c.l.b16 %v344
        %v355 = vunpack.c.l.b16 %v345
        %v356 = vunpack.c.l.b16 %v346
        %v357 = vunpack.c.l.b16 %v347
        %v358 = vpack.c.b16 %v354, %v353
        %v359 = vpack.c.b16 %v356, %v355
        %v360 = vpack.c.b16 %v357, %v357
        %vm363 = vcmask 293888
        %v365 = vsel %vm363, %v342, 0
        %vm367 = vcmask 1041408
        %v369 = vsel %vm367, %v360, 0
        %371 = vmatprep.subr.bf16.mxu0 0
        %372 = vmatpush1.bf16.msra.mxu0 %v358
        %373 = vmatprep.subr.bf16.mxu0 0
        %374 = vmatpush1.bf16.msra.mxu0 %v359
        %375 = vmatprep.subr.bf16.mxu0 0
        %376 = vmatpush1.bf16.msra.mxu0 %v369
        %377 = vmatprep.subr.bf16.mxu0 0
        %378 = vmatpush1.bf16.msra.mxu0 0
        %379 = vmatprep.subr.bf16.mxu0 0
        %380 = vmatpush1.bf16.msra.mxu0 0
        %381 = vmatprep.subr.bf16.mxu0 0
        %382 = vmatpush1.bf16.msra.mxu0 0
        %383 = vmatprep.subr.bf16.mxu0 0
        %384 = vmatpush1.bf16.msra.mxu0 0
        %385 = vmatprep.subr.bf16.mxu0 0
        %386 = vmatpush1.bf16.msra.mxu0 0
        %387 = vmatprep.subr.bf16.mxu0 0
        %388 = vmatpush1.bf16.msra.mxu0 0
        %389 = vmatprep.subr.bf16.mxu0 0
        %390 = vmatpush1.bf16.msra.mxu0 0
        %391 = vmatprep.subr.bf16.mxu0 0
        %392 = vmatpush1.bf16.msra.mxu0 0
        %393 = vmatprep.subr.bf16.mxu0 0
        %394 = vmatpush1.bf16.msra.mxu0 0
        %395 = vmatprep.subr.bf16.mxu0 0
        %396 = vmatpush1.bf16.msra.mxu0 0
        %397 = vmatprep.subr.bf16.mxu0 0
        %398 = vmatpush1.bf16.msra.mxu0 0
        %399 = vmatprep.subr.bf16.mxu0 0
        %400 = vmatpush1.bf16.msra.mxu0 0
        %401 = vmatprep.subr.bf16.mxu0 0
        %402 = vmatpush1.bf16.msra.mxu0 0
        %403 = vmatprep.mubr.bf16.mxu0 0
        %404 = vmatmul.mubr.bf16.gmra.mrb[0].mxu0 %v365
        %v405 = vpop.f32.mrb[0].mxu0
        %v406 = vadd.f32 0.0, %v405
        %v407 = vpop.f32.mrb[0].mxu0
        %v408 = vpop.f32.mrb[0].mxu0
        %v409 = vpop.f32.mrb[0].mxu0
        %410 = vdwg.mxu0
        %v411 = vpack.c.bf16 %v406, %v406
        %412 = vst [vmem:[%s297] sm:$0xf] %v411
        %v413 = vld [vmem:[#allocation2] sm:$0xff]
        %414 = vadd.xlane.f32.xlu0 %v406
        %v415 = vpop.xlane.xlu0 %414
        %v416 = vadd.f32 %v413, %v415
        %vm417 = vcmask 7168
        %418 = vst.msk [vmem:[#allocation2] sm:$0xff] %vm417, %v416
        %v419 = vld [vmem:[#allocation3] sm:$0xff]
        %v420 = vmul.f32 %v406, %v406
        %421 = vadd.xlane.f32.xlu0 %v420
        %v422 = vpop.xlane.xlu0 %421
        %v423 = vadd.f32 %v419, %v422
        %424 = vst.msk [vmem:[#allocation3] sm:$0xff] %vm417, %v423
        %p425 = scmp.eq.s32.totalorder %s26, 1
        // Predicated region
        $region74: #{tpu_custom_call.1} parent=64 // pred_check
          %p426 = pneg %p425
        $region75: #{tpu_custom_call.1} parent=64 // pred_check_branch
          %428 = sbr.rel (%p426) target = $region77
        $region76: #{tpu_custom_call.1} parent=64 // pred_region
          %v429 = vld [vmem:[#allocation2] sm:$0xff]
          %430 = vst.msk [vmem:[%s326] sm:$0xff] %vm417, %v429
          %v431 = vld [vmem:[#allocation3] sm:$0xff]
          %432 = vst.msk [vmem:[%s333] sm:$0xff] %vm417, %v431
        $region77: #{tpu_custom_call.1} parent=64 // pred_fallthru
          _
        %s433 = sand.u32 %s104, 1
        %s434 = scalar_lea.sflag [#allocation6], %s433
        %s435 = sand.u32 %s104, 1
        %s436 = smul.addr %s435, 4
        %s437 = scalar_lea.vmem [#allocation5], %s436
        %p438 = scmp.lt.s32.totalorder %s25, 1
        %s439 = scalar_select %p438, %s25, 1
        %p440 = scmp.lt.s32.totalorder %s24, 0
        %s441 = scalar_select %p440, %s24, 0
        %s442 = sadd.s32 %s441, %s439
        %s443 = smul.addr %s442, 8
        %s444 = scalar_lea.vmem %s3, %s443
        %p445 = scmp.lt.s32.totalorder %s25, 1
        %s446 = scalar_select %p445, %s25, 1
        %p447 = scmp.lt.s32.totalorder %s24, 0
        %s448 = scalar_select %p447, %s24, 0
        %s449 = sadd.s32 %s448, %s446
        %s450 = smul.addr %s449, 8
        %s451 = scalar_lea.vmem %s4, %s450
        // Predicated region
        $region78: #{tpu_custom_call.1} parent=64 // pred_check
          %p452 = pneg %p114
        $region79: #{tpu_custom_call.1} parent=64 // pred_check_branch
          %454 = sbr.rel (%p452) target = $region81
        $region80: #{tpu_custom_call.1} parent=64 // pred_region
          %s456 = ssub.s32 64, 64
          %457 = vsyncadd %s434, %s456
          %s458 = smul.addr %s24, 2
          %s459 = sadd.s32 %s26, %s458
          %s460 = smul.addr %s25, 2
          %s461 = sadd.s32 %s459, %s460
          %s462 = smul.addr %s461, 64
          %s463 = scalar_lea.hbm %s2, %s462
          %s465 = sshll.u32 %s437, 4
          %s466 = int_to_ptr.vmem [resolvable:$true] %s465
          %468 = dma.vmem_to_hbm [thread:$0]  %s466, 64, %s463, %s434
        $region81: #{tpu_custom_call.1} parent=64 // pred_fallthru
          _
        // Predicated region
        $region82: #{tpu_custom_call.1} parent=64 // pred_check
          %p469 = pneg %p142
        $region83: #{tpu_custom_call.1} parent=64 // pred_check_branch
          %471 = sbr.rel (%p469) target = $region85
        $region84: #{tpu_custom_call.1} parent=64 // pred_region
          _
        $region85: #{tpu_custom_call.1} parent=64 // pred_fallthru
          _
        // Predicated region
        $region86: #{tpu_custom_call.1} parent=64 // pred_check
          %p472 = pneg %p170
        $region87: #{tpu_custom_call.1} parent=64 // pred_check_branch
          %474 = sbr.rel (%p472) target = $region89
        $region88: #{tpu_custom_call.1} parent=64 // pred_region
          _
        $region89: #{tpu_custom_call.1} parent=64 // pred_fallthru
          _
      $region65: #{tpu_custom_call.1} parent=5 // pred_fallthru
        _
      %p475 = scmp.le.s32.totalorder 2, %s14
      // Predicated region
      $region90: #{tpu_custom_call.1} parent=5 // pred_check
        %p476 = pneg %p475
      $region91: #{tpu_custom_call.1} parent=5 // pred_check_branch
        %478 = sbr.rel (%p476) target = $region93
      $region92: #{tpu_custom_call.1} parent=5 // pred_region
        %s479 = ssub.s32 %s14, 2
        // Predicated region
        $region94: #{tpu_custom_call.1} parent=92 // pred_check
          %p480 = pneg %p120
        $region95: #{tpu_custom_call.1} parent=92 // pred_check_branch
          %482 = sbr.rel (%p480) target = $region97
        $region96: #{tpu_custom_call.1} parent=92 // pred_region
          %s483 = sand.u32 %s105, 1
          %s484 = scalar_lea.sflag [#allocation6], %s483
          %s485 = sand.u32 %s105, 1
          %s486 = smul.addr %s485, 4
          %s487 = scalar_lea.vmem [#allocation5], %s486
          %488 = dma.done %s484, 64
        $region97: #{tpu_custom_call.1} parent=92 // pred_fallthru
          _
        // Predicated region
        $region98: #{tpu_custom_call.1} parent=92 // pred_check
          %p489 = pneg %p148
        $region99: #{tpu_custom_call.1} parent=92 // pred_check_branch
          %491 = sbr.rel (%p489) target = $region101
        $region100: #{tpu_custom_call.1} parent=92 // pred_region
          %p492 = scmp.lt.s32.totalorder %s28, 1
          %s493 = scalar_select %p492, %s28, 1
          %p494 = scmp.lt.s32.totalorder %s27, 0
          %s495 = scalar_select %p494, %s27, 0
          %s496 = sadd.s32 %s495, %s493
          %s497 = smul.addr %s496, 8
          %s498 = scalar_lea.vmem %s3, %s497
        $region101: #{tpu_custom_call.1} parent=92 // pred_fallthru
          _
        // Predicated region
        $region102: #{tpu_custom_call.1} parent=92 // pred_check
          %p499 = pneg %p176
        $region103: #{tpu_custom_call.1} parent=92 // pred_check_branch
          %501 = sbr.rel (%p499) target = $region105
        $region104: #{tpu_custom_call.1} parent=92 // pred_region
          %p502 = scmp.lt.s32.totalorder %s28, 1
          %s503 = scalar_select %p502, %s28, 1
          %p504 = scmp.lt.s32.totalorder %s27, 0
          %s505 = scalar_select %p504, %s27, 0
          %s506 = sadd.s32 %s505, %s503
          %s507 = smul.addr %s506, 8
          %s508 = scalar_lea.vmem %s4, %s507
        $region105: #{tpu_custom_call.1} parent=92 // pred_fallthru
          _
      $region93: #{tpu_custom_call.1} parent=5 // pred_fallthru
        _
    $region6: #{tpu_custom_call.1} parent=1 // loop_footer
      %s18 = sadd.s32 1, %s14
    $region7: #{tpu_custom_call.1} parent=1 // loop_footer_branch
      %13 = sbr.rel target = $region3
    $region8: #{tpu_custom_call.1} parent=1 // loop_exit
      _
    %509 = vsyncpa [#allocation6], 1
    %s510 = scalar_lea.sflag [#allocation6], 1
    %511 = vsyncpa %s510, 1

</llo_original>
